<compile_context>
chip_gen: v5e
topology: v5e:2x2
jax: 0.10.0
libtpu: 0.0.40
codegen_flags: <defaults>
</compile_context>

<pallas_src>
import functools

import jax
import jax.numpy as jnp
from jax.experimental import pallas as pl
from jax.experimental.pallas import tpu as pltpu


def _deform_sample_kernel(idx_ref, w_ref, src_ref, out_ref, wmat_ref, *, hw, compute_dtype):
    """One (output-pixel strip, batch*channel tile) step.

    idx_ref:  (4, TN) i32  -- flat input-pixel index of the 4 bilinear corners
                              (wrapped into [0, HW); weight already zeroed if OOB)
    w_ref:    (4, TN) f32  -- validity-masked bilinear weights of the 4 corners
    src_ref:  (TM, HW)     -- tile of the flattened source (TM rows of B*C)
    out_ref:  (TM, TN)     -- resampled output tile
    wmat_ref: (HW, TN) f32 -- scratch; interpolation-matrix strip, cached across m
    """
    # Build the interpolation-matrix strip once per strip (m == 0) and reuse it for
    # every batch*channel tile.  OOB corners were wrapped mod HW in the wrapper but
    # their weight is already 0, so spurious matches contribute nothing (zero padding).
    @pl.when(pl.program_id(1) == 0)
    def _build_strip():
        tn = wmat_ref.shape[1]
        q = jax.lax.broadcasted_iota(jnp.int32, (hw, tn), 0)        # input-pixel row index
        wmat = jnp.where(q == idx_ref[0:1, :], w_ref[0:1, :], 0.0)
        for c in range(1, 4):
            wmat = wmat + jnp.where(q == idx_ref[c:c + 1, :], w_ref[c:c + 1, :], 0.0)
        wmat_ref[...] = wmat

    src = src_ref[...]
    wmat = wmat_ref[...]
    if compute_dtype is not None:
        # Optional reduced-precision contraction (e.g. bf16 on v6e/v7x MXU);
        # accumulation stays f32 via preferred_element_type.
        src = src.astype(compute_dtype)
        wmat = wmat.astype(compute_dtype)

    out_ref[...] = jnp.dot(
        src, wmat, preferred_element_type=jnp.float32
    ).astype(out_ref.dtype)


def _pick_tn(hw, tn_max=512):
    """Lane-strip width: a multiple of 128 that divides HW (falls back to full HW)."""
    if hw % 128 != 0:
        return hw
    tn = min(tn_max, hw)
    tn -= tn % 128
    while hw % tn:
        tn -= 128
    return tn


def _pick_tm(m, tm_max=256):
    """Batch*channel tile: full M if small, else a multiple-of-8 divisor of M."""
    if m <= tm_max:
        return m
    tm = tm_max - (tm_max % 8)
    while tm >= 8:
        if m % tm == 0:
            return tm
        tm -= 8
    return m


def deformable_transform(source, displacement, *, tn=None, tm=None, compute_dtype=None):
    """source: [B, C, H, W] f32 (NCHW); displacement: [1, 2, H, W] f32 (shared across batch)."""
    B, C, H, W = source.shape
    HW = H * W
    M = B * C

    # ---- glue (plain JAX): sampling coordinates + per-corner indices/weights ----
    # identity affine grid, align_corners=True  ->  linspace(-1, 1, size)
    gx = jnp.linspace(-1.0, 1.0, W, dtype=jnp.float32)             # x over width
    gy = jnp.linspace(-1.0, 1.0, H, dtype=jnp.float32)             # y over height
    sx = gx[None, :] + displacement[0, 0]                          # normalized x, (H, W)
    sy = gy[:, None] + displacement[0, 1]                          # normalized y, (H, W)
    # align_corners=True unnormalization: pix = (g + 1) * (size - 1) / 2
    px = (sx + 1.0) * (W - 1) * 0.5
    py = (sy + 1.0) * (H - 1) * 0.5

    x0 = jnp.floor(px).astype(jnp.int32)
    y0 = jnp.floor(py).astype(jnp.int32)
    fx = px - x0.astype(jnp.float32)
    fy = py - y0.astype(jnp.float32)

    idx_rows, w_rows = [], []
    for dy in (0, 1):
        for dx in (0, 1):
            cy = y0 + dy
            cx = x0 + dx
            w = (fx if dx else (1.0 - fx)) * (fy if dy else (1.0 - fy))
            valid = (cy >= 0) & (cy < H) & (cx >= 0) & (cx < W)
            w = jnp.where(valid, w, 0.0)                           # zero-padding mode
            flat = jnp.mod(cy * W + cx, HW)                        # wrap OOB aliases (weight is 0)
            idx_rows.append(flat.reshape(HW))
            w_rows.append(w.reshape(HW))
    corner_idx = jnp.stack(idx_rows, axis=0).astype(jnp.int32)     # (4, HW)
    corner_w = jnp.stack(w_rows, axis=0).astype(jnp.float32)       # (4, HW)

    src2d = source.reshape(M, HW)                                  # fold B,C into matmul M dim

    if tn is None:
        tn = _pick_tn(HW)
    if tm is None:
        tm = _pick_tm(M)
    assert HW % tn == 0, "strip width must divide H*W"
    assert M % tm == 0, "batch*channel tile must divide B*C"
    n_strips = HW // tn
    n_mtiles = M // tm

    kernel = functools.partial(_deform_sample_kernel, hw=HW, compute_dtype=compute_dtype)

    out2d = pl.pallas_call(
        kernel,
        out_shape=jax.ShapeDtypeStruct((M, HW), source.dtype),
        grid_spec=pltpu.PrefetchScalarGridSpec(
            num_scalar_prefetch=0,
            grid=(n_strips, n_mtiles),                            # strip outer, m inner
            in_specs=[
                pl.BlockSpec((4, tn), lambda n, m: (0, n)),       # corner flat indices (strip)
                pl.BlockSpec((4, tn), lambda n, m: (0, n)),       # corner weights (strip)
                pl.BlockSpec((tm, HW), lambda n, m: (m, 0)),      # source tile (B*C rows)
            ],
            out_specs=pl.BlockSpec((tm, tn), lambda n, m: (m, n)),
            scratch_shapes=[pltpu.VMEM((HW, tn), jnp.float32)],   # cached Wmat strip
        ),
        compiler_params=pltpu.CompilerParams(
            dimension_semantics=("parallel", "arbitrary"),        # strips independent (v7x 2-TC);
            vmem_limit_bytes=48 * 1024 * 1024,                    # m sequential (scratch reuse)
        ),
    )(corner_idx, corner_w, src2d)

    return out2d.reshape(B, C, H, W)


def _reference_grid_sample(source, displacement):
    """Pure-JAX reference of the PyTorch forward (bilinear, align_corners=True, zero pad)."""
    B, C, H, W = source.shape
    gx = jnp.linspace(-1.0, 1.0, W, dtype=jnp.float32)
    gy = jnp.linspace(-1.0, 1.0, H, dtype=jnp.float32)
    sx = gx[None, :] + displacement[0, 0]
    sy = gy[:, None] + displacement[0, 1]
    px = (sx + 1.0) * (W - 1) * 0.5
    py = (sy + 1.0) * (H - 1) * 0.5
    x0 = jnp.floor(px).astype(jnp.int32)
    y0 = jnp.floor(py).astype(jnp.int32)
    fx = px - x0
    fy = py - y0
    src_flat = source.reshape(B, C, H * W)
    out = jnp.zeros_like(source)
    for dy in (0, 1):
        for dx in (0, 1):
            cy = y0 + dy
            cx = x0 + dx
            w = (fx if dx else (1.0 - fx)) * (fy if dy else (1.0 - fy))
            valid = (cy >= 0) & (cy < H) & (cx >= 0) & (cx < W)
            w = jnp.where(valid, w, 0.0)
            idx = (jnp.clip(cy, 0, H - 1) * W + jnp.clip(cx, 0, W - 1)).reshape(-1)
            g = src_flat[:, :, idx].reshape(B, C, H, W)
            out = out + w[None, None] * g
    return out


if __name__ == "__main__":
    B, C, H, W = 2, 4, 16, 16
    key = jax.random.PRNGKey(0)
    k_src, k_disp, k_src2 = jax.random.split(key, 3)

    source = jax.random.normal(k_src, (B, C, H, W), dtype=jnp.float32)
    # Module __init__ uses zeros for the displacement parameter; here we use a small
    # deterministic field so the bilinear resampling path is actually exercised.
    displacement = 0.15 * jax.random.normal(k_disp, (1, 2, H, W), dtype=jnp.float32)

    ref = _reference_grid_sample(source, displacement)

    # Default tiling (single strip / single m-tile at this toy size).
    out = jax.block_until_ready(deformable_transform(source, displacement))
    assert out.shape == (B, C, H, W)
    assert jnp.allclose(out, ref, atol=1e-5, rtol=1e-5), "mismatch vs reference (default)"

    # Multi-strip path (2 strips of 128 lanes) exercising the parallel grid axis.
    out2 = jax.block_until_ready(deformable_transform(source, displacement, tn=128))
    assert jnp.allclose(out2, ref, atol=1e-5, rtol=1e-5), "mismatch vs reference (tn=128)"

    # Larger B*C with explicit m-tiling: exercises the cached-Wmat path (grid 2x2).
    source_big = jax.random.normal(k_src2, (B, 64, H, W), dtype=jnp.float32)
    ref_big = _reference_grid_sample(source_big, displacement)
    out3 = jax.block_until_ready(
        deformable_transform(source_big, displacement, tn=128, tm=64))
    assert jnp.allclose(out3, ref_big, atol=1e-5, rtol=1e-5), "mismatch vs reference (tiled m)"

    print("KERNEL_OK")
</pallas_src>

<mosaic_0001>
module attributes {stable_mosaic.version = 11 : i64} {
  func.func @_deform_sample_kernel(%arg0: i32, %arg1: i32, %arg2: memref<4x256xi32, #tpu.memory_space<vmem>>, %arg3: memref<4x256xf32, #tpu.memory_space<vmem>>, %arg4: memref<8x256xf32, #tpu.memory_space<vmem>>, %arg5: memref<8x256xf32, #tpu.memory_space<vmem>>, %arg6: memref<256x256xf32, #tpu.memory_space<vmem>>) attributes {dimension_semantics = [#tpu.dimension_semantics<parallel>, #tpu.dimension_semantics<arbitrary>], iteration_bounds = array<i64: 1, 1>, scalar_prefetch = 0 : i64, scratch_operands = 1 : i64, tpu.core_type = #tpu.core_type<tc>, window_params = [{transform_indices = @transform_0, window_bounds = array<i64: 4, 256>}, {transform_indices = @transform_1, window_bounds = array<i64: 4, 256>}, {transform_indices = @transform_2, window_bounds = array<i64: 8, 256>}, {transform_indices = @transform_3, window_bounds = array<i64: 8, 256>}]} {
    %c0_i32 = arith.constant 0 : i32
    %0 = arith.cmpi eq, %arg1, %c0_i32 : i32
    %1 = arith.extui %0 : i1 to i32
    %c0_i32_0 = arith.constant 0 : i32
    %2 = arith.cmpi ne, %1, %c0_i32_0 : i32
    scf.if %2 {
      %7 = tpu.iota {dimensions = array<i32: 0>} : vector<256x256xi32>
      %c0_6 = arith.constant 0 : index
      %c0_7 = arith.constant 0 : index
      %8 = vector.load %arg2[%c0_6, %c0_7] : memref<4x256xi32, #tpu.memory_space<vmem>>, vector<1x256xi32>
      %9 = vector.broadcast %8 : vector<1x256xi32> to vector<256x256xi32>
      %10 = arith.cmpi eq, %7, %9 : vector<256x256xi32>
      %c0_8 = arith.constant 0 : index
      %c0_9 = arith.constant 0 : index
      %11 = vector.load %arg3[%c0_8, %c0_9] : memref<4x256xf32, #tpu.memory_space<vmem>>, vector<1x256xf32>
      %cst_10 = arith.constant 0.000000e+00 : f32
      %12 = vector.shape_cast %11 : vector<1x256xf32> to vector<1x256xf32>
      %13 = vector.broadcast %12 : vector<1x256xf32> to vector<256x256xf32>
      %14 = vector.broadcast %cst_10 : f32 to vector<256x256xf32>
      %15 = arith.select %10, %13, %14 : vector<256x256xi1>, vector<256x256xf32>
      %c1 = arith.constant 1 : index
      %c0_11 = arith.constant 0 : index
      %16 = vector.load %arg2[%c1, %c0_11] : memref<4x256xi32, #tpu.memory_space<vmem>>, vector<1x256xi32>
      %17 = vector.broadcast %16 : vector<1x256xi32> to vector<256x256xi32>
      %18 = arith.cmpi eq, %7, %17 : vector<256x256xi32>
      %c1_12 = arith.constant 1 : index
      %c0_13 = arith.constant 0 : index
      %19 = vector.load %arg3[%c1_12, %c0_13] : memref<4x256xf32, #tpu.memory_space<vmem>>, vector<1x256xf32>
      %cst_14 = arith.constant 0.000000e+00 : f32
      %20 = vector.shape_cast %19 : vector<1x256xf32> to vector<1x256xf32>
      %21 = vector.broadcast %20 : vector<1x256xf32> to vector<256x256xf32>
      %22 = vector.broadcast %cst_14 : f32 to vector<256x256xf32>
      %23 = arith.select %18, %21, %22 : vector<256x256xi1>, vector<256x256xf32>
      %24 = arith.addf %15, %23 : vector<256x256xf32>
      %c2 = arith.constant 2 : index
      %c0_15 = arith.constant 0 : index
      %25 = vector.load %arg2[%c2, %c0_15] : memref<4x256xi32, #tpu.memory_space<vmem>>, vector<1x256xi32>
      %26 = vector.broadcast %25 : vector<1x256xi32> to vector<256x256xi32>
      %27 = arith.cmpi eq, %7, %26 : vector<256x256xi32>
      %c2_16 = arith.constant 2 : index
      %c0_17 = arith.constant 0 : index
      %28 = vector.load %arg3[%c2_16, %c0_17] : memref<4x256xf32, #tpu.memory_space<vmem>>, vector<1x256xf32>
      %cst_18 = arith.constant 0.000000e+00 : f32
      %29 = vector.shape_cast %28 : vector<1x256xf32> to vector<1x256xf32>
      %30 = vector.broadcast %29 : vector<1x256xf32> to vector<256x256xf32>
      %31 = vector.broadcast %cst_18 : f32 to vector<256x256xf32>
      %32 = arith.select %27, %30, %31 : vector<256x256xi1>, vector<256x256xf32>
      %33 = arith.addf %24, %32 : vector<256x256xf32>
      %c3 = arith.constant 3 : index
      %c0_19 = arith.constant 0 : index
      %34 = vector.load %arg2[%c3, %c0_19] : memref<4x256xi32, #tpu.memory_space<vmem>>, vector<1x256xi32>
      %35 = vector.broadcast %34 : vector<1x256xi32> to vector<256x256xi32>
      %36 = arith.cmpi eq, %7, %35 : vector<256x256xi32>
      %c3_20 = arith.constant 3 : index
      %c0_21 = arith.constant 0 : index
      %37 = vector.load %arg3[%c3_20, %c0_21] : memref<4x256xf32, #tpu.memory_space<vmem>>, vector<1x256xf32>
      %cst_22 = arith.constant 0.000000e+00 : f32
      %38 = vector.shape_cast %37 : vector<1x256xf32> to vector<1x256xf32>
      %39 = vector.broadcast %38 : vector<1x256xf32> to vector<256x256xf32>
      %40 = vector.broadcast %cst_22 : f32 to vector<256x256xf32>
      %41 = arith.select %36, %39, %40 : vector<256x256xi1>, vector<256x256xf32>
      %42 = arith.addf %33, %41 : vector<256x256xf32>
      %c0_23 = arith.constant 0 : index
      %c0_24 = arith.constant 0 : index
      %43 = vector.load %arg6[%c0_23, %c0_24] : memref<256x256xf32, #tpu.memory_space<vmem>>, vector<256x256xf32>
      tpu.vector_store %arg6[%c0_23, %c0_24], %42 {strides = array<i32>} : memref<256x256xf32, #tpu.memory_space<vmem>>, vector<256x256xf32>,
    } else {
    }
    %c0 = arith.constant 0 : index
    %c0_1 = arith.constant 0 : index
    %3 = vector.load %arg4[%c0, %c0_1] : memref<8x256xf32, #tpu.memory_space<vmem>>, vector<8x256xf32>
    %c0_2 = arith.constant 0 : index
    %c0_3 = arith.constant 0 : index
    %4 = vector.load %arg6[%c0_2, %c0_3] : memref<256x256xf32, #tpu.memory_space<vmem>>, vector<256x256xf32>
    %cst = arith.constant dense<0.000000e+00> : vector<8x256xf32>
    %5 = tpu.matmul %3, %4, %cst {dimension_numbers = #tpu.dot_dimension_numbers<[1], [0], [0], [1], [0, 0, 1, 1], [], []>} : vector<8x256xf32>, vector<256x256xf32>, vector<8x256xf32> -> vector<8x256xf32>
    %c0_4 = arith.constant 0 : index
    %c0_5 = arith.constant 0 : index
    %6 = vector.load %arg5[%c0_4, %c0_5] : memref<8x256xf32, #tpu.memory_space<vmem>>, vector<8x256xf32>
    tpu.vector_store %arg5[%c0_4, %c0_5], %5 {strides = array<i32>} : memref<8x256xf32, #tpu.memory_space<vmem>>, vector<8x256xf32>,
    return
  }
  func.func @transform_0(%arg0: i32, %arg1: i32) -> (i32, i32) {
    %c0_i32 = arith.constant 0 : i32
    %c0_i32_0 = arith.constant 0 : i32
    return %c0_i32, %arg0 : i32, i32
  }
  func.func @transform_1(%arg0: i32, %arg1: i32) -> (i32, i32) {
    %c0_i32 = arith.constant 0 : i32
    %c0_i32_0 = arith.constant 0 : i32
    return %c0_i32, %arg0 : i32, i32
  }
  func.func @transform_2(%arg0: i32, %arg1: i32) -> (i32, i32) {
    %c0_i32 = arith.constant 0 : i32
    %c0_i32_0 = arith.constant 0 : i32
    return %arg1, %c0_i32 : i32, i32
  }
  func.func @transform_3(%arg0: i32, %arg1: i32) -> (i32, i32) {
    %c0_i32 = arith.constant 0 : i32
    return %arg1, %arg0 : i32, i32
  }
}

</mosaic_0001>

<llo_original>
// kernel: tpu_custom_call.1
$region0: #{tpu_custom_call.1}
  #allocation0 [shape = 'u32[]', space=smem, size = 0x4, offset = 0x4, fixed_abs, tag = 'smem constant byte address 0x4 - core index']
  #allocation1 [shape = 'u32[72,128]{1,0:T(1,128)}', space=vmem, size = 0x9000, scoped, tag = 'internal scratch']
  #allocation2 [shape = 'f32[256,256]{1,0:T(8,128)}', space=vmem, size = 0x40000, scoped, tag = 'scratch operand']
  %s0 = inlined_call_operand.hbm [shape: s32[4,256], index: 0, kind: input, shape index: {}]
  %s1 = inlined_call_operand.hbm [shape: f32[4,256], index: 1, kind: input, shape index: {}]
  %s2 = inlined_call_operand.hbm [shape: f32[8,256], index: 2, kind: input, shape index: {}]
  %s3 = inlined_call_operand.hbm [shape: f32[8,256], index: 3, kind: output, shape index: {}]
  %s4 = sld [smem:[#allocation0]]
  $region38: #{tpu_custom_call.1} parent=0
    _
  %s6 = ssub.s32 1, %s4
  %s7 = scalar_select 0, %s6, %s4
  $region1: #{tpu_custom_call.1} parent=0
    #allocation3 [shape = 'u8[4096]{0}', space=vmem, size = 0x1000, scoped, tag = 'input window, operand 0, single buffered']
    #allocation4 [shape = 's32[1]{0}', space=sflag, size = 0x4, scoped, tag = 'scoped memory for tpu_custom_call.1']
    #allocation5 [shape = 's32[1]{0}', space=sflag, size = 0x4, scoped, tag = 'scoped memory for tpu_custom_call.1']
    #allocation6 [shape = 'u8[4096]{0}', space=vmem, size = 0x1000, scoped, tag = 'input window, operand 1, single buffered']
    #allocation7 [shape = 's32[1]{0}', space=sflag, size = 0x4, scoped, tag = 'scoped memory for tpu_custom_call.1']
    #allocation8 [shape = 'u8[8192]{0}', space=vmem, size = 0x2000, scoped, tag = 'input window, operand 2, single buffered']
    #allocation9 [shape = 'u8[8192]{0}', space=vmem, size = 0x2000, scoped, tag = 'output window, operand 0, single buffered']
    %8 = vsyncpa [#allocation4], 0
    %9 = vsyncpa [#allocation7], 0
    %10 = vsyncpa [#allocation5], 0
    // Predicated region
    $region2: #{tpu_custom_call.1} parent=1 // pred_check
      _
    $region3: #{tpu_custom_call.1} parent=1 // pred_check_branch
      %12 = sbr.rel (0) target = $region5
    $region4: #{tpu_custom_call.1} parent=1 // pred_region
      %14 = vsyncadd [#allocation4], 0
      %s16 = sshll.u32 %s0, 4
      %s17 = int_to_ptr.hbm [resolvable:$true] %s16
      %s18 = sshll.u32 [#allocation3], 4
      %s19 = int_to_ptr.vmem [resolvable:$true] %s18
      %21 = dma.hbm_to_vmem [thread:$0]  %s17, 128, %s19, [#allocation4]
    $region5: #{tpu_custom_call.1} parent=1 // pred_fallthru
      _
    // Predicated region
    $region6: #{tpu_custom_call.1} parent=1 // pred_check
      _
    $region7: #{tpu_custom_call.1} parent=1 // pred_check_branch
      %23 = sbr.rel (0) target = $region9
    $region8: #{tpu_custom_call.1} parent=1 // pred_region
      %25 = vsyncadd [#allocation7], 0
      %s27 = sshll.u32 %s1, 4
      %s28 = int_to_ptr.hbm [resolvable:$true] %s27
      %s29 = sshll.u32 [#allocation6], 4
      %s30 = int_to_ptr.vmem [resolvable:$true] %s29
      %32 = dma.hbm_to_vmem [thread:$0]  %s28, 128, %s30, [#allocation7]
    $region9: #{tpu_custom_call.1} parent=1 // pred_fallthru
      _
    // Predicated region
    $region10: #{tpu_custom_call.1} parent=1 // pred_check
      _
    $region11: #{tpu_custom_call.1} parent=1 // pred_check_branch
      %34 = sbr.rel (0) target = $region13
    $region12: #{tpu_custom_call.1} parent=1 // pred_region
      %36 = vsyncadd [#allocation7], 0
      %s38 = sshll.u32 %s2, 4
      %s39 = int_to_ptr.hbm [resolvable:$true] %s38
      %s40 = sshll.u32 [#allocation8], 4
      %s41 = int_to_ptr.vmem [resolvable:$true] %s40
      %43 = dma.hbm_to_vmem [thread:$0]  %s39, 256, %s41, [#allocation7]
    $region13: #{tpu_custom_call.1} parent=1 // pred_fallthru
      _
    // Predicated region
    $region14: #{tpu_custom_call.1} parent=1 // pred_check
      _
    $region15: #{tpu_custom_call.1} parent=1 // pred_check_branch
      %45 = sbr.rel (0) target = $region17
    $region16: #{tpu_custom_call.1} parent=1 // pred_region
      %47 = dma.done [#allocation4], 128
    $region17: #{tpu_custom_call.1} parent=1 // pred_fallthru
      _
    // Predicated region
    $region18: #{tpu_custom_call.1} parent=1 // pred_check
      _
    $region19: #{tpu_custom_call.1} parent=1 // pred_check_branch
      %49 = sbr.rel (0) target = $region21
    $region20: #{tpu_custom_call.1} parent=1 // pred_region
      %51 = dma.done [#allocation7], 128
    $region21: #{tpu_custom_call.1} parent=1 // pred_fallthru
      _
    // Predicated region
    $region22: #{tpu_custom_call.1} parent=1 // pred_check
      _
    $region23: #{tpu_custom_call.1} parent=1 // pred_check_branch
      %53 = sbr.rel (0) target = $region25
    $region24: #{tpu_custom_call.1} parent=1 // pred_region
      %55 = dma.done [#allocation7], 256
    $region25: #{tpu_custom_call.1} parent=1 // pred_fallthru
      _
    %p56 = scmp.eq.s32.totalorder 0, 0
    // Predicated region
    $region26: #{tpu_custom_call.1} parent=1 // pred_check
      %p57 = pneg %p56
    $region27: #{tpu_custom_call.1} parent=1 // pred_check_branch
      %59 = sbr.rel (%p57) target = $region29
    $region28: #{tpu_custom_call.1} parent=1 // pred_region
      %v60 = vlaneseq
      %v61 = vshrl.u32 %v60, 7
      %v62 = vadd.s32 %v61, 8
      %v63 = vadd.s32 %v61, 16
      %v64 = vadd.s32 %v61, 24
      %v65 = vadd.s32 %v61, 32
      %v66 = vadd.s32 %v61, 40
      %v67 = vadd.s32 %v61, 48
      %v68 = vadd.s32 %v61, 56
      %v69 = vadd.s32 %v61, 64
      %v70 = vadd.s32 %v61, 72
      %v71 = vadd.s32 %v61, 80
      %v72 = vadd.s32 %v61, 88
      %v73 = vadd.s32 %v61, 96
      %v74 = vadd.s32 %v61, 104
      %v75 = vadd.s32 %v61, 112
      %v76 = vadd.s32 %v61, 120
      %v77 = vadd.s32 %v61, 128
      %v78 = vadd.s32 %v61, 136
      %v79 = vadd.s32 %v61, 144
      %v80 = vadd.s32 %v61, 152
      %v81 = vadd.s32 %v61, 160
      %v82 = vadd.s32 %v61, 168
      %v83 = vadd.s32 %v61, 176
      %v84 = vadd.s32 %v61, 184
      %v85 = vadd.s32 %v61, 192
      %v86 = vadd.s32 %v61, 200
      %v87 = vadd.s32 %v61, 208
      %v88 = vadd.s32 %v61, 216
      %v89 = vadd.s32 %v61, 224
      %v90 = vadd.s32 %v61, 232
      %v91 = vadd.s32 %v61, 240
      %v92 = vadd.s32 %v61, 248
      %v93 = vld [vmem:[#allocation3] ss:$4 sm:$0x3]
      %v94 = vperm.slane %v93, 0
      %v95 = vperm.slane %v93, 1
      %vm96 = vcmp.eq.s32.totalorder %v61, %v94
      %vm97 = vcmp.eq.s32.totalorder %v61, %v95
      %vm98 = vcmp.eq.s32.totalorder %v62, %v94
      %vm99 = vcmp.eq.s32.totalorder %v62, %v95
      %vm100 = vcmp.eq.s32.totalorder %v63, %v94
      %vm101 = vcmp.eq.s32.totalorder %v63, %v95
      %vm102 = vcmp.eq.s32.totalorder %v64, %v94
      %vm103 = vcmp.eq.s32.totalorder %v64, %v95
      %vm104 = vcmp.eq.s32.totalorder %v65, %v94
      %vm105 = vcmp.eq.s32.totalorder %v65, %v95
      %vm106 = vcmp.eq.s32.totalorder %v66, %v94
      %vm107 = vcmp.eq.s32.totalorder %v66, %v95
      %vm108 = vcmp.eq.s32.totalorder %v67, %v94
      %vm109 = vcmp.eq.s32.totalorder %v67, %v95
      %vm110 = vcmp.eq.s32.totalorder %v68, %v94
      %vm111 = vcmp.eq.s32.totalorder %v68, %v95
      %vm112 = vcmp.eq.s32.totalorder %v69, %v94
      %vm113 = vcmp.eq.s32.totalorder %v69, %v95
      %vm114 = vcmp.eq.s32.totalorder %v70, %v94
      %vm115 = vcmp.eq.s32.totalorder %v70, %v95
      %vm116 = vcmp.eq.s32.totalorder %v71, %v94
      %vm117 = vcmp.eq.s32.totalorder %v71, %v95
      %vm118 = vcmp.eq.s32.totalorder %v72, %v94
      %vm119 = vcmp.eq.s32.totalorder %v72, %v95
      %vm120 = vcmp.eq.s32.totalorder %v73, %v94
      %vm121 = vcmp.eq.s32.totalorder %v73, %v95
      %vm122 = vcmp.eq.s32.totalorder %v74, %v94
      %vm123 = vcmp.eq.s32.totalorder %v74, %v95
      %vm124 = vcmp.eq.s32.totalorder %v75, %v94
      %vm125 = vcmp.eq.s32.totalorder %v75, %v95
      %vm126 = vcmp.eq.s32.totalorder %v76, %v94
      %vm127 = vcmp.eq.s32.totalorder %v76, %v95
      %vm128 = vcmp.eq.s32.totalorder %v77, %v94
      %vm129 = vcmp.eq.s32.totalorder %v77, %v95
      %vm130 = vcmp.eq.s32.totalorder %v78, %v94
      %vm131 = vcmp.eq.s32.totalorder %v78, %v95
      %vm132 = vcmp.eq.s32.totalorder %v79, %v94
      %vm133 = vcmp.eq.s32.totalorder %v79, %v95
      %vm134 = vcmp.eq.s32.totalorder %v80, %v94
      %vm135 = vcmp.eq.s32.totalorder %v80, %v95
      %vm136 = vcmp.eq.s32.totalorder %v81, %v94
      %vm137 = vcmp.eq.s32.totalorder %v81, %v95
      %vm138 = vcmp.eq.s32.totalorder %v82, %v94
      %vm139 = vcmp.eq.s32.totalorder %v82, %v95
      %vm140 = vcmp.eq.s32.totalorder %v83, %v94
      %vm141 = vcmp.eq.s32.totalorder %v83, %v95
      %vm142 = vcmp.eq.s32.totalorder %v84, %v94
      %vm143 = vcmp.eq.s32.totalorder %v84, %v95
      %vm144 = vcmp.eq.s32.totalorder %v85, %v94
      %vm145 = vcmp.eq.s32.totalorder %v85, %v95
      %vm146 = vcmp.eq.s32.totalorder %v86, %v94
      %vm147 = vcmp.eq.s32.totalorder %v86, %v95
      %vm148 = vcmp.eq.s32.totalorder %v87, %v94
      %vm149 = vcmp.eq.s32.totalorder %v87, %v95
      %vm150 = vcmp.eq.s32.totalorder %v88, %v94
      %vm151 = vcmp.eq.s32.totalorder %v88, %v95
      %vm152 = vcmp.eq.s32.totalorder %v89, %v94
      %vm153 = vcmp.eq.s32.totalorder %v89, %v95
      %vm154 = vcmp.eq.s32.totalorder %v90, %v94
      %vm155 = vcmp.eq.s32.totalorder %v90, %v95
      %vm156 = vcmp.eq.s32.totalorder %v91, %v94
      %vm157 = vcmp.eq.s32.totalorder %v91, %v95
      %vm158 = vcmp.eq.s32.totalorder %v92, %v94
      %vm159 = vcmp.eq.s32.totalorder %v92, %v95
      %v160 = vld [vmem:[#allocation6] ss:$4 sm:$0x3]
      %v162 = vperm.slane %v160, 0
      %v163 = vperm.slane %v160, 1
      %v166 = vsel %vm96, %v162, 0.0
      %v167 = vsel %vm97, %v163, 0.0
      %v168 = vsel %vm98, %v162, 0.0
      %v169 = vsel %vm99, %v163, 0.0
      %v170 = vsel %vm100, %v162, 0.0
      %v171 = vsel %vm101, %v163, 0.0
      %v172 = vsel %vm102, %v162, 0.0
      %v173 = vsel %vm103, %v163, 0.0
      %v174 = vsel %vm104, %v162, 0.0
      %v175 = vsel %vm105, %v163, 0.0
      %v176 = vsel %vm106, %v162, 0.0
      %v177 = vsel %vm107, %v163, 0.0
      %v178 = vsel %vm108, %v162, 0.0
      %v179 = vsel %vm109, %v163, 0.0
      %v180 = vsel %vm110, %v162, 0.0
      %v181 = vsel %vm111, %v163, 0.0
      %v182 = vsel %vm112, %v162, 0.0
      %v183 = vsel %vm113, %v163, 0.0
      %v184 = vsel %vm114, %v162, 0.0
      %v185 = vsel %vm115, %v163, 0.0
      %v186 = vsel %vm116, %v162, 0.0
      %v187 = vsel %vm117, %v163, 0.0
      %v188 = vsel %vm118, %v162, 0.0
      %v189 = vsel %vm119, %v163, 0.0
      %v190 = vsel %vm120, %v162, 0.0
      %v191 = vsel %vm121, %v163, 0.0
      %v192 = vsel %vm122, %v162, 0.0
      %v193 = vsel %vm123, %v163, 0.0
      %v194 = vsel %vm124, %v162, 0.0
      %v195 = vsel %vm125, %v163, 0.0
      %v196 = vsel %vm126, %v162, 0.0
      %v197 = vsel %vm127, %v163, 0.0
      %v198 = vsel %vm128, %v162, 0.0
      %v199 = vsel %vm129, %v163, 0.0
      %v200 = vsel %vm130, %v162, 0.0
      %v201 = vsel %vm131, %v163, 0.0
      %v202 = vsel %vm132, %v162, 0.0
      %v203 = vsel %vm133, %v163, 0.0
      %v204 = vsel %vm134, %v162, 0.0
      %v205 = vsel %vm135, %v163, 0.0
      %v206 = vsel %vm136, %v162, 0.0
      %v207 = vsel %vm137, %v163, 0.0
      %v208 = vsel %vm138, %v162, 0.0
      %v209 = vsel %vm139, %v163, 0.0
      %v210 = vsel %vm140, %v162, 0.0
      %v211 = vsel %vm141, %v163, 0.0
      %v212 = vsel %vm142, %v162, 0.0
      %v213 = vsel %vm143, %v163, 0.0
      %v214 = vsel %vm144, %v162, 0.0
      %v215 = vsel %vm145, %v163, 0.0
      %v216 = vsel %vm146, %v162, 0.0
      %v217 = vsel %vm147, %v163, 0.0
      %v218 = vsel %vm148, %v162, 0.0
      %v219 = vsel %vm149, %v163, 0.0
      %v220 = vsel %vm150, %v162, 0.0
      %v221 = vsel %vm151, %v163, 0.0
      %v222 = vsel %vm152, %v162, 0.0
      %v223 = vsel %vm153, %v163, 0.0
      %v224 = vsel %vm154, %v162, 0.0
      %v225 = vsel %vm155, %v163, 0.0
      %v226 = vsel %vm156, %v162, 0.0
      %v227 = vsel %vm157, %v163, 0.0
      %v228 = vsel %vm158, %v162, 0.0
      %v229 = vsel %vm159, %v163, 0.0
      %s230 = scalar_lea.vmem [#allocation3], 1
      %v231 = vld [vmem:[%s230] ss:$4 sm:$0x3]
      %v232 = vperm.slane %v231, 0
      %v233 = vperm.slane %v231, 1
      %vm234 = vcmp.eq.s32.totalorder %v61, %v232
      %vm235 = vcmp.eq.s32.totalorder %v61, %v233
      %vm236 = vcmp.eq.s32.totalorder %v62, %v232
      %vm237 = vcmp.eq.s32.totalorder %v62, %v233
      %vm238 = vcmp.eq.s32.totalorder %v63, %v232
      %vm239 = vcmp.eq.s32.totalorder %v63, %v233
      %vm240 = vcmp.eq.s32.totalorder %v64, %v232
      %vm241 = vcmp.eq.s32.totalorder %v64, %v233
      %vm242 = vcmp.eq.s32.totalorder %v65, %v232
      %vm243 = vcmp.eq.s32.totalorder %v65, %v233
      %vm244 = vcmp.eq.s32.totalorder %v66, %v232
      %vm245 = vcmp.eq.s32.totalorder %v66, %v233
      %vm246 = vcmp.eq.s32.totalorder %v67, %v232
      %vm247 = vcmp.eq.s32.totalorder %v67, %v233
      %vm248 = vcmp.eq.s32.totalorder %v68, %v232
      %vm249 = vcmp.eq.s32.totalorder %v68, %v233
      %vm250 = vcmp.eq.s32.totalorder %v69, %v232
      %vm251 = vcmp.eq.s32.totalorder %v69, %v233
      %vm252 = vcmp.eq.s32.totalorder %v70, %v232
      %vm253 = vcmp.eq.s32.totalorder %v70, %v233
      %vm254 = vcmp.eq.s32.totalorder %v71, %v232
      %vm255 = vcmp.eq.s32.totalorder %v71, %v233
      %vm256 = vcmp.eq.s32.totalorder %v72, %v232
      %vm257 = vcmp.eq.s32.totalorder %v72, %v233
      %vm258 = vcmp.eq.s32.totalorder %v73, %v232
      %vm259 = vcmp.eq.s32.totalorder %v73, %v233
      %vm260 = vcmp.eq.s32.totalorder %v74, %v232
      %vm261 = vcmp.eq.s32.totalorder %v74, %v233
      %vm262 = vcmp.eq.s32.totalorder %v75, %v232
      %vm263 = vcmp.eq.s32.totalorder %v75, %v233
      %vm264 = vcmp.eq.s32.totalorder %v76, %v232
      %vm265 = vcmp.eq.s32.totalorder %v76, %v233
      %vm266 = vcmp.eq.s32.totalorder %v77, %v232
      %vm267 = vcmp.eq.s32.totalorder %v77, %v233
      %vm268 = vcmp.eq.s32.totalorder %v78, %v232
      %vm269 = vcmp.eq.s32.totalorder %v78, %v233
      %vm270 = vcmp.eq.s32.totalorder %v79, %v232
      %vm271 = vcmp.eq.s32.totalorder %v79, %v233
      %vm272 = vcmp.eq.s32.totalorder %v80, %v232
      %vm273 = vcmp.eq.s32.totalorder %v80, %v233
      %vm274 = vcmp.eq.s32.totalorder %v81, %v232
      %vm275 = vcmp.eq.s32.totalorder %v81, %v233
      %vm276 = vcmp.eq.s32.totalorder %v82, %v232
      %vm277 = vcmp.eq.s32.totalorder %v82, %v233
      %vm278 = vcmp.eq.s32.totalorder %v83, %v232
      %vm279 = vcmp.eq.s32.totalorder %v83, %v233
      %vm280 = vcmp.eq.s32.totalorder %v84, %v232
      %vm281 = vcmp.eq.s32.totalorder %v84, %v233
      %vm282 = vcmp.eq.s32.totalorder %v85, %v232
      %vm283 = vcmp.eq.s32.totalorder %v85, %v233
      %vm284 = vcmp.eq.s32.totalorder %v86, %v232
      %vm285 = vcmp.eq.s32.totalorder %v86, %v233
      %vm286 = vcmp.eq.s32.totalorder %v87, %v232
      %vm287 = vcmp.eq.s32.totalorder %v87, %v233
      %vm288 = vcmp.eq.s32.totalorder %v88, %v232
      %vm289 = vcmp.eq.s32.totalorder %v88, %v233
      %vm290 = vcmp.eq.s32.totalorder %v89, %v232
      %vm291 = vcmp.eq.s32.totalorder %v89, %v233
      %vm292 = vcmp.eq.s32.totalorder %v90, %v232
      %vm293 = vcmp.eq.s32.totalorder %v90, %v233
      %vm294 = vcmp.eq.s32.totalorder %v91, %v232
      %vm295 = vcmp.eq.s32.totalorder %v91, %v233
      %vm296 = vcmp.eq.s32.totalorder %v92, %v232
      %vm297 = vcmp.eq.s32.totalorder %v92, %v233
      %s298 = scalar_lea.vmem [#allocation6], 1
      %v299 = vld [vmem:[%s298] ss:$4 sm:$0x3]
      %v301 = vperm.slane %v299, 0
      %v302 = vperm.slane %v299, 1
      %v305 = vsel %vm234, %v301, 0.0
      %v306 = vsel %vm235, %v302, 0.0
      %v307 = vsel %vm236, %v301, 0.0
      %v308 = vsel %vm237, %v302, 0.0
      %v309 = vsel %vm238, %v301, 0.0
      %v310 = vsel %vm239, %v302, 0.0
      %v311 = vsel %vm240, %v301, 0.0
      %v312 = vsel %vm241, %v302, 0.0
      %v313 = vsel %vm242, %v301, 0.0
      %v314 = vsel %vm243, %v302, 0.0
      %v315 = vsel %vm244, %v301, 0.0
      %v316 = vsel %vm245, %v302, 0.0
      %v317 = vsel %vm246, %v301, 0.0
      %v318 = vsel %vm247, %v302, 0.0
      %v319 = vsel %vm248, %v301, 0.0
      %v320 = vsel %vm249, %v302, 0.0
      %v321 = vsel %vm250, %v301, 0.0
      %v322 = vsel %vm251, %v302, 0.0
      %v323 = vsel %vm252, %v301, 0.0
      %v324 = vsel %vm253, %v302, 0.0
      %v325 = vsel %vm254, %v301, 0.0
      %v326 = vsel %vm255, %v302, 0.0
      %v327 = vsel %vm256, %v301, 0.0
      %v328 = vsel %vm257, %v302, 0.0
      %v329 = vsel %vm258, %v301, 0.0
      %v330 = vsel %vm259, %v302, 0.0
      %v331 = vsel %vm260, %v301, 0.0
      %v332 = vsel %vm261, %v302, 0.0
      %v333 = vsel %vm262, %v301, 0.0
      %v334 = vsel %vm263, %v302, 0.0
      %v335 = vsel %vm264, %v301, 0.0
      %v336 = vsel %vm265, %v302, 0.0
      %v337 = vsel %vm266, %v301, 0.0
      %v338 = vsel %vm267, %v302, 0.0
      %v339 = vsel %vm268, %v301, 0.0
      %v340 = vsel %vm269, %v302, 0.0
      %v341 = vsel %vm270, %v301, 0.0
      %v342 = vsel %vm271, %v302, 0.0
      %v343 = vsel %vm272, %v301, 0.0
      %v344 = vsel %vm273, %v302, 0.0
      %v345 = vsel %vm274, %v301, 0.0
      %v346 = vsel %vm275, %v302, 0.0
      %v347 = vsel %vm276, %v301, 0.0
      %v348 = vsel %vm277, %v302, 0.0
      %v349 = vsel %vm278, %v301, 0.0
      %v350 = vsel %vm279, %v302, 0.0
      %v351 = vsel %vm280, %v301, 0.0
      %v352 = vsel %vm281, %v302, 0.0
      %v353 = vsel %vm282, %v301, 0.0
      %v354 = vsel %vm283, %v302, 0.0
      %v355 = vsel %vm284, %v301, 0.0
      %v356 = vsel %vm285, %v302, 0.0
      %v357 = vsel %vm286, %v301, 0.0
      %v358 = vsel %vm287, %v302, 0.0
      %v359 = vsel %vm288, %v301, 0.0
      %v360 = vsel %vm289, %v302, 0.0
      %v361 = vsel %vm290, %v301, 0.0
      %v362 = vsel %vm291, %v302, 0.0
      %v363 = vsel %vm292, %v301, 0.0
      %v364 = vsel %vm293, %v302, 0.0
      %v365 = vsel %vm294, %v301, 0.0
      %v366 = vsel %vm295, %v302, 0.0
      %v367 = vsel %vm296, %v301, 0.0
      %v368 = vsel %vm297, %v302, 0.0
      %v369 = vadd.f32 %v166, %v305
      %v370 = vadd.f32 %v167, %v306
      %v371 = vadd.f32 %v168, %v307
      %v372 = vadd.f32 %v169, %v308
      %v373 = vadd.f32 %v170, %v309
      %v374 = vadd.f32 %v171, %v310
      %v375 = vadd.f32 %v172, %v311
      %v376 = vadd.f32 %v173, %v312
      %v377 = vadd.f32 %v174, %v313
      %v378 = vadd.f32 %v175, %v314
      %v379 = vadd.f32 %v176, %v315
      %v380 = vadd.f32 %v177, %v316
      %v381 = vadd.f32 %v178, %v317
      %v382 = vadd.f32 %v179, %v318
      %v383 = vadd.f32 %v180, %v319
      %v384 = vadd.f32 %v181, %v320
      %v385 = vadd.f32 %v182, %v321
      %v386 = vadd.f32 %v183, %v322
      %v387 = vadd.f32 %v184, %v323
      %v388 = vadd.f32 %v185, %v324
      %v389 = vadd.f32 %v186, %v325
      %v390 = vadd.f32 %v187, %v326
      %v391 = vadd.f32 %v188, %v327
      %v392 = vadd.f32 %v189, %v328
      %v393 = vadd.f32 %v190, %v329
      %v394 = vadd.f32 %v191, %v330
      %v395 = vadd.f32 %v192, %v331
      %v396 = vadd.f32 %v193, %v332
      %v397 = vadd.f32 %v194, %v333
      %v398 = vadd.f32 %v195, %v334
      %v399 = vadd.f32 %v196, %v335
      %v400 = vadd.f32 %v197, %v336
      %v401 = vadd.f32 %v198, %v337
      %v402 = vadd.f32 %v199, %v338
      %v403 = vadd.f32 %v200, %v339
      %v404 = vadd.f32 %v201, %v340
      %v405 = vadd.f32 %v202, %v341
      %v406 = vadd.f32 %v203, %v342
      %v407 = vadd.f32 %v204, %v343
      %v408 = vadd.f32 %v205, %v344
      %v409 = vadd.f32 %v206, %v345
      %v410 = vadd.f32 %v207, %v346
      %v411 = vadd.f32 %v208, %v347
      %v412 = vadd.f32 %v209, %v348
      %v413 = vadd.f32 %v210, %v349
      %v414 = vadd.f32 %v211, %v350
      %v415 = vadd.f32 %v212, %v351
      %v416 = vadd.f32 %v213, %v352
      %v417 = vadd.f32 %v214, %v353
      %v418 = vadd.f32 %v215, %v354
      %v419 = vadd.f32 %v216, %v355
      %v420 = vadd.f32 %v217, %v356
      %v421 = vadd.f32 %v218, %v357
      %v422 = vadd.f32 %v219, %v358
      %v423 = vadd.f32 %v220, %v359
      %v424 = vadd.f32 %v221, %v360
      %v425 = vadd.f32 %v222, %v361
      %v426 = vadd.f32 %v223, %v362
      %v427 = vadd.f32 %v224, %v363
      %v428 = vadd.f32 %v225, %v364
      %v429 = vadd.f32 %v226, %v365
      %v430 = vadd.f32 %v227, %v366
      %v431 = vadd.f32 %v228, %v367
      %v432 = vadd.f32 %v229, %v368
      %s433 = scalar_lea.vmem [#allocation3], 2
      %v434 = vld [vmem:[%s433] ss:$4 sm:$0x3]
      %v435 = vperm.slane %v434, 0
      %v436 = vperm.slane %v434, 1
      %vm437 = vcmp.eq.s32.totalorder %v61, %v435
      %vm438 = vcmp.eq.s32.totalorder %v61, %v436
      %vm439 = vcmp.eq.s32.totalorder %v62, %v435
      %vm440 = vcmp.eq.s32.totalorder %v62, %v436
      %vm441 = vcmp.eq.s32.totalorder %v63, %v435
      %vm442 = vcmp.eq.s32.totalorder %v63, %v436
      %vm443 = vcmp.eq.s32.totalorder %v64, %v435
      %vm444 = vcmp.eq.s32.totalorder %v64, %v436
      %vm445 = vcmp.eq.s32.totalorder %v65, %v435
      %vm446 = vcmp.eq.s32.totalorder %v65, %v436
      %vm447 = vcmp.eq.s32.totalorder %v66, %v435
      %vm448 = vcmp.eq.s32.totalorder %v66, %v436
      %vm449 = vcmp.eq.s32.totalorder %v67, %v435
      %vm450 = vcmp.eq.s32.totalorder %v67, %v436
      %vm451 = vcmp.eq.s32.totalorder %v68, %v435
      %vm452 = vcmp.eq.s32.totalorder %v68, %v436
      %vm453 = vcmp.eq.s32.totalorder %v69, %v435
      %vm454 = vcmp.eq.s32.totalorder %v69, %v436
      %vm455 = vcmp.eq.s32.totalorder %v70, %v435
      %vm456 = vcmp.eq.s32.totalorder %v70, %v436
      %vm457 = vcmp.eq.s32.totalorder %v71, %v435
      %vm458 = vcmp.eq.s32.totalorder %v71, %v436
      %vm459 = vcmp.eq.s32.totalorder %v72, %v435
      %vm460 = vcmp.eq.s32.totalorder %v72, %v436
      %vm461 = vcmp.eq.s32.totalorder %v73, %v435
      %vm462 = vcmp.eq.s32.totalorder %v73, %v436
      %vm463 = vcmp.eq.s32.totalorder %v74, %v435
      %vm464 = vcmp.eq.s32.totalorder %v74, %v436
      %vm465 = vcmp.eq.s32.totalorder %v75, %v435
      %vm466 = vcmp.eq.s32.totalorder %v75, %v436
      %vm467 = vcmp.eq.s32.totalorder %v76, %v435
      %vm468 = vcmp.eq.s32.totalorder %v76, %v436
      %vm469 = vcmp.eq.s32.totalorder %v77, %v435
      %vm470 = vcmp.eq.s32.totalorder %v77, %v436
      %vm471 = vcmp.eq.s32.totalorder %v78, %v435
      %vm472 = vcmp.eq.s32.totalorder %v78, %v436
      %vm473 = vcmp.eq.s32.totalorder %v79, %v435
      %vm474 = vcmp.eq.s32.totalorder %v79, %v436
      %vm475 = vcmp.eq.s32.totalorder %v80, %v435
      %vm476 = vcmp.eq.s32.totalorder %v80, %v436
      %vm477 = vcmp.eq.s32.totalorder %v81, %v435
      %vm478 = vcmp.eq.s32.totalorder %v81, %v436
      %vm479 = vcmp.eq.s32.totalorder %v82, %v435
      %vm480 = vcmp.eq.s32.totalorder %v82, %v436
      %vm481 = vcmp.eq.s32.totalorder %v83, %v435
      %vm482 = vcmp.eq.s32.totalorder %v83, %v436
      %vm483 = vcmp.eq.s32.totalorder %v84, %v435
      %vm484 = vcmp.eq.s32.totalorder %v84, %v436
      %vm485 = vcmp.eq.s32.totalorder %v85, %v435
      %vm486 = vcmp.eq.s32.totalorder %v85, %v436
      %vm487 = vcmp.eq.s32.totalorder %v86, %v435
      %vm488 = vcmp.eq.s32.totalorder %v86, %v436
      %vm489 = vcmp.eq.s32.totalorder %v87, %v435
      %vm490 = vcmp.eq.s32.totalorder %v87, %v436
      %vm491 = vcmp.eq.s32.totalorder %v88, %v435
      %vm492 = vcmp.eq.s32.totalorder %v88, %v436
      %vm493 = vcmp.eq.s32.totalorder %v89, %v435
      %vm494 = vcmp.eq.s32.totalorder %v89, %v436
      %vm495 = vcmp.eq.s32.totalorder %v90, %v435
      %vm496 = vcmp.eq.s32.totalorder %v90, %v436
      %vm497 = vcmp.eq.s32.totalorder %v91, %v435
      %vm498 = vcmp.eq.s32.totalorder %v91, %v436
      %vm499 = vcmp.eq.s32.totalorder %v92, %v435
      %vm500 = vcmp.eq.s32.totalorder %v92, %v436
      %s501 = scalar_lea.vmem [#allocation6], 2
      %v502 = vld [vmem:[%s501] ss:$4 sm:$0x3]
      %v504 = vperm.slane %v502, 0
      %v505 = vperm.slane %v502, 1
      %v508 = vsel %vm437, %v504, 0.0
      %v509 = vsel %vm438, %v505, 0.0
      %v510 = vsel %vm439, %v504, 0.0
      %v511 = vsel %vm440, %v505, 0.0
      %v512 = vsel %vm441, %v504, 0.0
      %v513 = vsel %vm442, %v505, 0.0
      %v514 = vsel %vm443, %v504, 0.0
      %v515 = vsel %vm444, %v505, 0.0
      %v516 = vsel %vm445, %v504, 0.0
      %v517 = vsel %vm446, %v505, 0.0
      %v518 = vsel %vm447, %v504, 0.0
      %v519 = vsel %vm448, %v505, 0.0
      %v520 = vsel %vm449, %v504, 0.0
      %v521 = vsel %vm450, %v505, 0.0
      %v522 = vsel %vm451, %v504, 0.0
      %v523 = vsel %vm452, %v505, 0.0
      %v524 = vsel %vm453, %v504, 0.0
      %v525 = vsel %vm454, %v505, 0.0
      %v526 = vsel %vm455, %v504, 0.0
      %v527 = vsel %vm456, %v505, 0.0
      %v528 = vsel %vm457, %v504, 0.0
      %v529 = vsel %vm458, %v505, 0.0
      %v530 = vsel %vm459, %v504, 0.0
      %v531 = vsel %vm460, %v505, 0.0
      %v532 = vsel %vm461, %v504, 0.0
      %v533 = vsel %vm462, %v505, 0.0
      %v534 = vsel %vm463, %v504, 0.0
      %v535 = vsel %vm464, %v505, 0.0
      %v536 = vsel %vm465, %v504, 0.0
      %v537 = vsel %vm466, %v505, 0.0
      %v538 = vsel %vm467, %v504, 0.0
      %v539 = vsel %vm468, %v505, 0.0
      %v540 = vsel %vm469, %v504, 0.0
      %v541 = vsel %vm470, %v505, 0.0
      %v542 = vsel %vm471, %v504, 0.0
      %v543 = vsel %vm472, %v505, 0.0
      %v544 = vsel %vm473, %v504, 0.0
      %v545 = vsel %vm474, %v505, 0.0
      %v546 = vsel %vm475, %v504, 0.0
      %v547 = vsel %vm476, %v505, 0.0
      %v548 = vsel %vm477, %v504, 0.0
      %v549 = vsel %vm478, %v505, 0.0
      %v550 = vsel %vm479, %v504, 0.0
      %v551 = vsel %vm480, %v505, 0.0
      %v552 = vsel %vm481, %v504, 0.0
      %v553 = vsel %vm482, %v505, 0.0
      %v554 = vsel %vm483, %v504, 0.0
      %v555 = vsel %vm484, %v505, 0.0
      %v556 = vsel %vm485, %v504, 0.0
      %v557 = vsel %vm486, %v505, 0.0
      %v558 = vsel %vm487, %v504, 0.0
      %v559 = vsel %vm488, %v505, 0.0
      %v560 = vsel %vm489, %v504, 0.0
      %v561 = vsel %vm490, %v505, 0.0
      %v562 = vsel %vm491, %v504, 0.0
      %v563 = vsel %vm492, %v505, 0.0
      %v564 = vsel %vm493, %v504, 0.0
      %v565 = vsel %vm494, %v505, 0.0
      %v566 = vsel %vm495, %v504, 0.0
      %v567 = vsel %vm496, %v505, 0.0
      %v568 = vsel %vm497, %v504, 0.0
      %v569 = vsel %vm498, %v505, 0.0
      %v570 = vsel %vm499, %v504, 0.0
      %v571 = vsel %vm500, %v505, 0.0
      %v572 = vadd.f32 %v369, %v508
      %v573 = vadd.f32 %v370, %v509
      %v574 = vadd.f32 %v371, %v510
      %v575 = vadd.f32 %v372, %v511
      %v576 = vadd.f32 %v373, %v512
      %v577 = vadd.f32 %v374, %v513
      %v578 = vadd.f32 %v375, %v514
      %v579 = vadd.f32 %v376, %v515
      %v580 = vadd.f32 %v377, %v516
      %v581 = vadd.f32 %v378, %v517
      %v582 = vadd.f32 %v379, %v518
      %v583 = vadd.f32 %v380, %v519
      %v584 = vadd.f32 %v381, %v520
      %v585 = vadd.f32 %v382, %v521
      %v586 = vadd.f32 %v383, %v522
      %v587 = vadd.f32 %v384, %v523
      %v588 = vadd.f32 %v385, %v524
      %v589 = vadd.f32 %v386, %v525
      %v590 = vadd.f32 %v387, %v526
      %v591 = vadd.f32 %v388, %v527
      %v592 = vadd.f32 %v389, %v528
      %v593 = vadd.f32 %v390, %v529
      %v594 = vadd.f32 %v391, %v530
      %v595 = vadd.f32 %v392, %v531
      %v596 = vadd.f32 %v393, %v532
      %v597 = vadd.f32 %v394, %v533
      %v598 = vadd.f32 %v395, %v534
      %v599 = vadd.f32 %v396, %v535
      %v600 = vadd.f32 %v397, %v536
      %v601 = vadd.f32 %v398, %v537
      %v602 = vadd.f32 %v399, %v538
      %v603 = vadd.f32 %v400, %v539
      %v604 = vadd.f32 %v401, %v540
      %v605 = vadd.f32 %v402, %v541
      %v606 = vadd.f32 %v403, %v542
      %v607 = vadd.f32 %v404, %v543
      %v608 = vadd.f32 %v405, %v544
      %v609 = vadd.f32 %v406, %v545
      %v610 = vadd.f32 %v407, %v546
      %v611 = vadd.f32 %v408, %v547
      %v612 = vadd.f32 %v409, %v548
      %v613 = vadd.f32 %v410, %v549
      %v614 = vadd.f32 %v411, %v550
      %v615 = vadd.f32 %v412, %v551
      %v616 = vadd.f32 %v413, %v552
      %v617 = vadd.f32 %v414, %v553
      %v618 = vadd.f32 %v415, %v554
      %v619 = vadd.f32 %v416, %v555
      %v620 = vadd.f32 %v417, %v556
      %v621 = vadd.f32 %v418, %v557
      %v622 = vadd.f32 %v419, %v558
      %v623 = vadd.f32 %v420, %v559
      %v624 = vadd.f32 %v421, %v560
      %v625 = vadd.f32 %v422, %v561
      %v626 = vadd.f32 %v423, %v562
      %v627 = vadd.f32 %v424, %v563
      %v628 = vadd.f32 %v425, %v564
      %v629 = vadd.f32 %v426, %v565
      %v630 = vadd.f32 %v427, %v566
      %v631 = vadd.f32 %v428, %v567
      %v632 = vadd.f32 %v429, %v568
      %v633 = vadd.f32 %v430, %v569
      %v634 = vadd.f32 %v431, %v570
      %v635 = vadd.f32 %v432, %v571
      %s636 = scalar_lea.vmem [#allocation3], 3
      %v637 = vld [vmem:[%s636] ss:$4 sm:$0x3]
      %v638 = vperm.slane %v637, 0
      %v639 = vperm.slane %v637, 1
      %vm640 = vcmp.eq.s32.totalorder %v61, %v638
      %vm641 = vcmp.eq.s32.totalorder %v61, %v639
      %vm642 = vcmp.eq.s32.totalorder %v62, %v638
      %vm643 = vcmp.eq.s32.totalorder %v62, %v639
      %vm644 = vcmp.eq.s32.totalorder %v63, %v638
      %vm645 = vcmp.eq.s32.totalorder %v63, %v639
      %vm646 = vcmp.eq.s32.totalorder %v64, %v638
      %vm647 = vcmp.eq.s32.totalorder %v64, %v639
      %vm648 = vcmp.eq.s32.totalorder %v65, %v638
      %vm649 = vcmp.eq.s32.totalorder %v65, %v639
      %vm650 = vcmp.eq.s32.totalorder %v66, %v638
      %vm651 = vcmp.eq.s32.totalorder %v66, %v639
      %vm652 = vcmp.eq.s32.totalorder %v67, %v638
      %vm653 = vcmp.eq.s32.totalorder %v67, %v639
      %vm654 = vcmp.eq.s32.totalorder %v68, %v638
      %vm655 = vcmp.eq.s32.totalorder %v68, %v639
      %vm656 = vcmp.eq.s32.totalorder %v69, %v638
      %vm657 = vcmp.eq.s32.totalorder %v69, %v639
      %vm658 = vcmp.eq.s32.totalorder %v70, %v638
      %vm659 = vcmp.eq.s32.totalorder %v70, %v639
      %vm660 = vcmp.eq.s32.totalorder %v71, %v638
      %vm661 = vcmp.eq.s32.totalorder %v71, %v639
      %vm662 = vcmp.eq.s32.totalorder %v72, %v638
      %vm663 = vcmp.eq.s32.totalorder %v72, %v639
      %vm664 = vcmp.eq.s32.totalorder %v73, %v638
      %vm665 = vcmp.eq.s32.totalorder %v73, %v639
      %vm666 = vcmp.eq.s32.totalorder %v74, %v638
      %vm667 = vcmp.eq.s32.totalorder %v74, %v639
      %vm668 = vcmp.eq.s32.totalorder %v75, %v638
      %vm669 = vcmp.eq.s32.totalorder %v75, %v639
      %vm670 = vcmp.eq.s32.totalorder %v76, %v638
      %vm671 = vcmp.eq.s32.totalorder %v76, %v639
      %vm672 = vcmp.eq.s32.totalorder %v77, %v638
      %vm673 = vcmp.eq.s32.totalorder %v77, %v639
      %vm674 = vcmp.eq.s32.totalorder %v78, %v638
      %vm675 = vcmp.eq.s32.totalorder %v78, %v639
      %vm676 = vcmp.eq.s32.totalorder %v79, %v638
      %vm677 = vcmp.eq.s32.totalorder %v79, %v639
      %vm678 = vcmp.eq.s32.totalorder %v80, %v638
      %vm679 = vcmp.eq.s32.totalorder %v80, %v639
      %vm680 = vcmp.eq.s32.totalorder %v81, %v638
      %vm681 = vcmp.eq.s32.totalorder %v81, %v639
      %vm682 = vcmp.eq.s32.totalorder %v82, %v638
      %vm683 = vcmp.eq.s32.totalorder %v82, %v639
      %vm684 = vcmp.eq.s32.totalorder %v83, %v638
      %vm685 = vcmp.eq.s32.totalorder %v83, %v639
      %vm686 = vcmp.eq.s32.totalorder %v84, %v638
      %vm687 = vcmp.eq.s32.totalorder %v84, %v639
      %vm688 = vcmp.eq.s32.totalorder %v85, %v638
      %vm689 = vcmp.eq.s32.totalorder %v85, %v639
      %vm690 = vcmp.eq.s32.totalorder %v86, %v638
      %vm691 = vcmp.eq.s32.totalorder %v86, %v639
      %vm692 = vcmp.eq.s32.totalorder %v87, %v638
      %vm693 = vcmp.eq.s32.totalorder %v87, %v639
      %vm694 = vcmp.eq.s32.totalorder %v88, %v638
      %vm695 = vcmp.eq.s32.totalorder %v88, %v639
      %vm696 = vcmp.eq.s32.totalorder %v89, %v638
      %vm697 = vcmp.eq.s32.totalorder %v89, %v639
      %vm698 = vcmp.eq.s32.totalorder %v90, %v638
      %vm699 = vcmp.eq.s32.totalorder %v90, %v639
      %vm700 = vcmp.eq.s32.totalorder %v91, %v638
      %vm701 = vcmp.eq.s32.totalorder %v91, %v639
      %vm702 = vcmp.eq.s32.totalorder %v92, %v638
      %vm703 = vcmp.eq.s32.totalorder %v92, %v639
      %s704 = scalar_lea.vmem [#allocation6], 3
      %v705 = vld [vmem:[%s704] ss:$4 sm:$0x3]
      %v707 = vperm.slane %v705, 0
      %v708 = vperm.slane %v705, 1
      %v711 = vsel %vm640, %v707, 0.0
      %v712 = vsel %vm641, %v708, 0.0
      %v713 = vsel %vm642, %v707, 0.0
      %v714 = vsel %vm643, %v708, 0.0
      %v715 = vsel %vm644, %v707, 0.0
      %v716 = vsel %vm645, %v708, 0.0
      %v717 = vsel %vm646, %v707, 0.0
      %v718 = vsel %vm647, %v708, 0.0
      %v719 = vsel %vm648, %v707, 0.0
      %v720 = vsel %vm649, %v708, 0.0
      %v721 = vsel %vm650, %v707, 0.0
      %v722 = vsel %vm651, %v708, 0.0
      %v723 = vsel %vm652, %v707, 0.0
      %v724 = vsel %vm653, %v708, 0.0
      %v725 = vsel %vm654, %v707, 0.0
      %v726 = vsel %vm655, %v708, 0.0
      %v727 = vsel %vm656, %v707, 0.0
      %v728 = vsel %vm657, %v708, 0.0
      %v729 = vsel %vm658, %v707, 0.0
      %v730 = vsel %vm659, %v708, 0.0
      %v731 = vsel %vm660, %v707, 0.0
      %v732 = vsel %vm661, %v708, 0.0
      %v733 = vsel %vm662, %v707, 0.0
      %v734 = vsel %vm663, %v708, 0.0
      %v735 = vsel %vm664, %v707, 0.0
      %v736 = vsel %vm665, %v708, 0.0
      %v737 = vsel %vm666, %v707, 0.0
      %v738 = vsel %vm667, %v708, 0.0
      %v739 = vsel %vm668, %v707, 0.0
      %v740 = vsel %vm669, %v708, 0.0
      %v741 = vsel %vm670, %v707, 0.0
      %v742 = vsel %vm671, %v708, 0.0
      %v743 = vsel %vm672, %v707, 0.0
      %v744 = vsel %vm673, %v708, 0.0
      %v745 = vsel %vm674, %v707, 0.0
      %v746 = vsel %vm675, %v708, 0.0
      %v747 = vsel %vm676, %v707, 0.0
      %v748 = vsel %vm677, %v708, 0.0
      %v749 = vsel %vm678, %v707, 0.0
      %v750 = vsel %vm679, %v708, 0.0
      %v751 = vsel %vm680, %v707, 0.0
      %v752 = vsel %vm681, %v708, 0.0
      %v753 = vsel %vm682, %v707, 0.0
      %v754 = vsel %vm683, %v708, 0.0
      %v755 = vsel %vm684, %v707, 0.0
      %v756 = vsel %vm685, %v708, 0.0
      %v757 = vsel %vm686, %v707, 0.0
      %v758 = vsel %vm687, %v708, 0.0
      %v759 = vsel %vm688, %v707, 0.0
      %v760 = vsel %vm689, %v708, 0.0
      %v761 = vsel %vm690, %v707, 0.0
      %v762 = vsel %vm691, %v708, 0.0
      %v763 = vsel %vm692, %v707, 0.0
      %v764 = vsel %vm693, %v708, 0.0
      %v765 = vsel %vm694, %v707, 0.0
      %v766 = vsel %vm695, %v708, 0.0
      %v767 = vsel %vm696, %v707, 0.0
      %v768 = vsel %vm697, %v708, 0.0
      %v769 = vsel %vm698, %v707, 0.0
      %v770 = vsel %vm699, %v708, 0.0
      %v771 = vsel %vm700, %v707, 0.0
      %v772 = vsel %vm701, %v708, 0.0
      %v773 = vsel %vm702, %v707, 0.0
      %v774 = vsel %vm703, %v708, 0.0
      %v775 = vadd.f32 %v572, %v711
      %v776 = vadd.f32 %v573, %v712
      %v777 = vadd.f32 %v574, %v713
      %v778 = vadd.f32 %v575, %v714
      %v779 = vadd.f32 %v576, %v715
      %v780 = vadd.f32 %v577, %v716
      %v781 = vadd.f32 %v578, %v717
      %v782 = vadd.f32 %v579, %v718
      %v783 = vadd.f32 %v580, %v719
      %v784 = vadd.f32 %v581, %v720
      %v785 = vadd.f32 %v582, %v721
      %v786 = vadd.f32 %v583, %v722
      %v787 = vadd.f32 %v584, %v723
      %v788 = vadd.f32 %v585, %v724
      %v789 = vadd.f32 %v586, %v725
      %v790 = vadd.f32 %v587, %v726
      %v791 = vadd.f32 %v588, %v727
      %v792 = vadd.f32 %v589, %v728
      %v793 = vadd.f32 %v590, %v729
      %v794 = vadd.f32 %v591, %v730
      %v795 = vadd.f32 %v592, %v731
      %v796 = vadd.f32 %v593, %v732
      %v797 = vadd.f32 %v594, %v733
      %v798 = vadd.f32 %v595, %v734
      %v799 = vadd.f32 %v596, %v735
      %v800 = vadd.f32 %v597, %v736
      %v801 = vadd.f32 %v598, %v737
      %v802 = vadd.f32 %v599, %v738
      %v803 = vadd.f32 %v600, %v739
      %v804 = vadd.f32 %v601, %v740
      %v805 = vadd.f32 %v602, %v741
      %v806 = vadd.f32 %v603, %v742
      %v807 = vadd.f32 %v604, %v743
      %v808 = vadd.f32 %v605, %v744
      %v809 = vadd.f32 %v606, %v745
      %v810 = vadd.f32 %v607, %v746
      %v811 = vadd.f32 %v608, %v747
      %v812 = vadd.f32 %v609, %v748
      %v813 = vadd.f32 %v610, %v749
      %v814 = vadd.f32 %v611, %v750
      %v815 = vadd.f32 %v612, %v751
      %v816 = vadd.f32 %v613, %v752
      %v817 = vadd.f32 %v614, %v753
      %v818 = vadd.f32 %v615, %v754
      %v819 = vadd.f32 %v616, %v755
      %v820 = vadd.f32 %v617, %v756
      %v821 = vadd.f32 %v618, %v757
      %v822 = vadd.f32 %v619, %v758
      %v823 = vadd.f32 %v620, %v759
      %v824 = vadd.f32 %v621, %v760
      %v825 = vadd.f32 %v622, %v761
      %v826 = vadd.f32 %v623, %v762
      %v827 = vadd.f32 %v624, %v763
      %v828 = vadd.f32 %v625, %v764
      %v829 = vadd.f32 %v626, %v765
      %v830 = vadd.f32 %v627, %v766
      %v831 = vadd.f32 %v628, %v767
      %v832 = vadd.f32 %v629, %v768
      %v833 = vadd.f32 %v630, %v769
      %v834 = vadd.f32 %v631, %v770
      %v835 = vadd.f32 %v632, %v771
      %v836 = vadd.f32 %v633, %v772
      %v837 = vadd.f32 %v634, %v773
      %v838 = vadd.f32 %v635, %v774
      %839 = vst [vmem:[#allocation2] sm:$0xff] %v775
      %840 = vst [vmem:[#allocation2 + $0x8] sm:$0xff] %v776
      %841 = vst [vmem:[#allocation2 + $0x10] sm:$0xff] %v777
      %842 = vst [vmem:[#allocation2 + $0x18] sm:$0xff] %v778
      %843 = vst [vmem:[#allocation2 + $0x20] sm:$0xff] %v779
      %844 = vst [vmem:[#allocation2 + $0x28] sm:$0xff] %v780
      %845 = vst [vmem:[#allocation2 + $0x30] sm:$0xff] %v781
      %846 = vst [vmem:[#allocation2 + $0x38] sm:$0xff] %v782
      %847 = vst [vmem:[#allocation2 + $0x40] sm:$0xff] %v783
      %848 = vst [vmem:[#allocation2 + $0x48] sm:$0xff] %v784
      %849 = vst [vmem:[#allocation2 + $0x50] sm:$0xff] %v785
      %850 = vst [vmem:[#allocation2 + $0x58] sm:$0xff] %v786
      %851 = vst [vmem:[#allocation2 + $0x60] sm:$0xff] %v787
      %852 = vst [vmem:[#allocation2 + $0x68] sm:$0xff] %v788
      %853 = vst [vmem:[#allocation2 + $0x70] sm:$0xff] %v789
      %854 = vst [vmem:[#allocation2 + $0x78] sm:$0xff] %v790
      %855 = vst [vmem:[#allocation2 + $0x80] sm:$0xff] %v791
      %856 = vst [vmem:[#allocation2 + $0x88] sm:$0xff] %v792
      %857 = vst [vmem:[#allocation2 + $0x90] sm:$0xff] %v793
      %858 = vst [vmem:[#allocation2 + $0x98] sm:$0xff] %v794
      %859 = vst [vmem:[#allocation2 + $0xa0] sm:$0xff] %v795
      %860 = vst [vmem:[#allocation2 + $0xa8] sm:$0xff] %v796
      %861 = vst [vmem:[#allocation2 + $0xb0] sm:$0xff] %v797
      %862 = vst [vmem:[#allocation2 + $0xb8] sm:$0xff] %v798
      %863 = vst [vmem:[#allocation2 + $0xc0] sm:$0xff] %v799
      %864 = vst [vmem:[#allocation2 + $0xc8] sm:$0xff] %v800
      %865 = vst [vmem:[#allocation2 + $0xd0] sm:$0xff] %v801
      %866 = vst [vmem:[#allocation2 + $0xd8] sm:$0xff] %v802
      %867 = vst [vmem:[#allocation2 + $0xe0] sm:$0xff] %v803
      %868 = vst [vmem:[#allocation2 + $0xe8] sm:$0xff] %v804
      %869 = vst [vmem:[#allocation2 + $0xf0] sm:$0xff] %v805
      %870 = vst [vmem:[#allocation2 + $0xf8] sm:$0xff] %v806
      %871 = vst [vmem:[#allocation2 + $0x100] sm:$0xff] %v807
      %872 = vst [vmem:[#allocation2 + $0x108] sm:$0xff] %v808
      %873 = vst [vmem:[#allocation2 + $0x110] sm:$0xff] %v809
      %874 = vst [vmem:[#allocation2 + $0x118] sm:$0xff] %v810
      %875 = vst [vmem:[#allocation2 + $0x120] sm:$0xff] %v811
      %876 = vst [vmem:[#allocation2 + $0x128] sm:$0xff] %v812
      %877 = vst [vmem:[#allocation2 + $0x130] sm:$0xff] %v813
      %878 = vst [vmem:[#allocation2 + $0x138] sm:$0xff] %v814
      %879 = vst [vmem:[#allocation2 + $0x140] sm:$0xff] %v815
      %880 = vst [vmem:[#allocation2 + $0x148] sm:$0xff] %v816
      %881 = vst [vmem:[#allocation2 + $0x150] sm:$0xff] %v817
      %882 = vst [vmem:[#allocation2 + $0x158] sm:$0xff] %v818
      %883 = vst [vmem:[#allocation2 + $0x160] sm:$0xff] %v819
      %884 = vst [vmem:[#allocation2 + $0x168] sm:$0xff] %v820
      %885 = vst [vmem:[#allocation2 + $0x170] sm:$0xff] %v821
      %886 = vst [vmem:[#allocation2 + $0x178] sm:$0xff] %v822
      %887 = vst [vmem:[#allocation2 + $0x180] sm:$0xff] %v823
      %888 = vst [vmem:[#allocation2 + $0x188] sm:$0xff] %v824
      %889 = vst [vmem:[#allocation2 + $0x190] sm:$0xff] %v825
      %890 = vst [vmem:[#allocation2 + $0x198] sm:$0xff] %v826
      %891 = vst [vmem:[#allocation2 + $0x1a0] sm:$0xff] %v827
      %892 = vst [vmem:[#allocation2 + $0x1a8] sm:$0xff] %v828
      %893 = vst [vmem:[#allocation2 + $0x1b0] sm:$0xff] %v829
      %894 = vst [vmem:[#allocation2 + $0x1b8] sm:$0xff] %v830
      %895 = vst [vmem:[#allocation2 + $0x1c0] sm:$0xff] %v831
      %896 = vst [vmem:[#allocation2 + $0x1c8] sm:$0xff] %v832
      %897 = vst [vmem:[#allocation2 + $0x1d0] sm:$0xff] %v833
      %898 = vst [vmem:[#allocation2 + $0x1d8] sm:$0xff] %v834
      %899 = vst [vmem:[#allocation2 + $0x1e0] sm:$0xff] %v835
      %900 = vst [vmem:[#allocation2 + $0x1e8] sm:$0xff] %v836
      %901 = vst [vmem:[#allocation2 + $0x1f0] sm:$0xff] %v837
      %902 = vst [vmem:[#allocation2 + $0x1f8] sm:$0xff] %v838
    $region29: #{tpu_custom_call.1} parent=1 // pred_fallthru
      _
    %v903 = vld [vmem:[#allocation8] sm:$0xff]
    %v904 = vld [vmem:[#allocation8 + $0x8] sm:$0xff]
    %v905 = vld [vmem:[#allocation2] sm:$0xff]
    %v906 = vld [vmem:[#allocation2 + $0x8] sm:$0xff]
    %v907 = vld [vmem:[#allocation2 + $0x10] sm:$0xff]
    %v908 = vld [vmem:[#allocation2 + $0x18] sm:$0xff]
    %v909 = vld [vmem:[#allocation2 + $0x20] sm:$0xff]
    %v910 = vld [vmem:[#allocation2 + $0x28] sm:$0xff]
    %v911 = vld [vmem:[#allocation2 + $0x30] sm:$0xff]
    %v912 = vld [vmem:[#allocation2 + $0x38] sm:$0xff]
    %v913 = vld [vmem:[#allocation2 + $0x40] sm:$0xff]
    %v914 = vld [vmem:[#allocation2 + $0x48] sm:$0xff]
    %v915 = vld [vmem:[#allocation2 + $0x50] sm:$0xff]
    %v916 = vld [vmem:[#allocation2 + $0x58] sm:$0xff]
    %v917 = vld [vmem:[#allocation2 + $0x60] sm:$0xff]
    %v918 = vld [vmem:[#allocation2 + $0x68] sm:$0xff]
    %v919 = vld [vmem:[#allocation2 + $0x70] sm:$0xff]
    %v920 = vld [vmem:[#allocation2 + $0x78] sm:$0xff]
    %v921 = vld [vmem:[#allocation2 + $0x80] sm:$0xff]
    %v922 = vld [vmem:[#allocation2 + $0x88] sm:$0xff]
    %v923 = vld [vmem:[#allocation2 + $0x90] sm:$0xff]
    %v924 = vld [vmem:[#allocation2 + $0x98] sm:$0xff]
    %v925 = vld [vmem:[#allocation2 + $0xa0] sm:$0xff]
    %v926 = vld [vmem:[#allocation2 + $0xa8] sm:$0xff]
    %v927 = vld [vmem:[#allocation2 + $0xb0] sm:$0xff]
    %v928 = vld [vmem:[#allocation2 + $0xb8] sm:$0xff]
    %v929 = vld [vmem:[#allocation2 + $0xc0] sm:$0xff]
    %v930 = vld [vmem:[#allocation2 + $0xc8] sm:$0xff]
    %v931 = vld [vmem:[#allocation2 + $0xd0] sm:$0xff]
    %v932 = vld [vmem:[#allocation2 + $0xd8] sm:$0xff]
    %v933 = vld [vmem:[#allocation2 + $0xe0] sm:$0xff]
    %v934 = vld [vmem:[#allocation2 + $0xe8] sm:$0xff]
    %v935 = vld [vmem:[#allocation2 + $0xf0] sm:$0xff]
    %v936 = vld [vmem:[#allocation2 + $0xf8] sm:$0xff]
    %v937 = vld [vmem:[#allocation2 + $0x100] sm:$0xff]
    %v938 = vld [vmem:[#allocation2 + $0x108] sm:$0xff]
    %v939 = vld [vmem:[#allocation2 + $0x110] sm:$0xff]
    %v940 = vld [vmem:[#allocation2 + $0x118] sm:$0xff]
    %v941 = vld [vmem:[#allocation2 + $0x120] sm:$0xff]
    %v942 = vld [vmem:[#allocation2 + $0x128] sm:$0xff]
    %v943 = vld [vmem:[#allocation2 + $0x130] sm:$0xff]
    %v944 = vld [vmem:[#allocation2 + $0x138] sm:$0xff]
    %v945 = vld [vmem:[#allocation2 + $0x140] sm:$0xff]
    %v946 = vld [vmem:[#allocation2 + $0x148] sm:$0xff]
    %v947 = vld [vmem:[#allocation2 + $0x150] sm:$0xff]
    %v948 = vld [vmem:[#allocation2 + $0x158] sm:$0xff]
    %v949 = vld [vmem:[#allocation2 + $0x160] sm:$0xff]
    %v950 = vld [vmem:[#allocation2 + $0x168] sm:$0xff]
    %v951 = vld [vmem:[#allocation2 + $0x170] sm:$0xff]
    %v952 = vld [vmem:[#allocation2 + $0x178] sm:$0xff]
    %v953 = vld [vmem:[#allocation2 + $0x180] sm:$0xff]
    %v954 = vld [vmem:[#allocation2 + $0x188] sm:$0xff]
    %v955 = vld [vmem:[#allocation2 + $0x190] sm:$0xff]
    %v956 = vld [vmem:[#allocation2 + $0x198] sm:$0xff]
    %v957 = vld [vmem:[#allocation2 + $0x1a0] sm:$0xff]
    %v958 = vld [vmem:[#allocation2 + $0x1a8] sm:$0xff]
    %v959 = vld [vmem:[#allocation2 + $0x1b0] sm:$0xff]
    %v960 = vld [vmem:[#allocation2 + $0x1b8] sm:$0xff]
    %v961 = vld [vmem:[#allocation2 + $0x1c0] sm:$0xff]
    %v962 = vld [vmem:[#allocation2 + $0x1c8] sm:$0xff]
    %v963 = vld [vmem:[#allocation2 + $0x1d0] sm:$0xff]
    %v964 = vld [vmem:[#allocation2 + $0x1d8] sm:$0xff]
    %v965 = vld [vmem:[#allocation2 + $0x1e0] sm:$0xff]
    %v966 = vld [vmem:[#allocation2 + $0x1e8] sm:$0xff]
    %v967 = vld [vmem:[#allocation2 + $0x1f0] sm:$0xff]
    %v968 = vld [vmem:[#allocation2 + $0x1f8] sm:$0xff]
    %969 = vmatpush.msra.mxu0 %v935
    %970 = vmatpush.msra.mxu0 %v933
    %971 = vmatpush.msra.mxu0 %v931
    %972 = vmatpush.msra.mxu0 %v929
    %973 = vmatpush.msra.mxu0 %v927
    %974 = vmatpush.msra.mxu0 %v925
    %975 = vmatpush.msra.mxu0 %v923
    %976 = vmatpush.msra.mxu0 %v921
    %977 = vmatpush.msra.mxu0 %v919
    %978 = vmatpush.msra.mxu0 %v917
    %979 = vmatpush.msra.mxu0 %v915
    %980 = vmatpush.msra.mxu0 %v913
    %981 = vmatpush.msra.mxu0 %v911
    %982 = vmatpush.msra.mxu0 %v909
    %983 = vmatpush.msra.mxu0 %v907
    %984 = vmatpush.msra.mxu0 %v905
    %985 = vmatmul.f32.gmra.mxu0 %v903
    %v986 = vpop.f32.mrf.mxu0
    %v987 = vadd.f32 0.0, %v986
    %988 = vdwg.mxu0
    %989 = vmatpush.msra.mxu0 %v967
    %990 = vmatpush.msra.mxu0 %v965
    %991 = vmatpush.msra.mxu0 %v963
    %992 = vmatpush.msra.mxu0 %v961
    %993 = vmatpush.msra.mxu0 %v959
    %994 = vmatpush.msra.mxu0 %v957
    %995 = vmatpush.msra.mxu0 %v955
    %996 = vmatpush.msra.mxu0 %v953
    %997 = vmatpush.msra.mxu0 %v951
    %998 = vmatpush.msra.mxu0 %v949
    %999 = vmatpush.msra.mxu0 %v947
    %1000 = vmatpush.msra.mxu0 %v945
    %1001 = vmatpush.msra.mxu0 %v943
    %1002 = vmatpush.msra.mxu0 %v941
    %1003 = vmatpush.msra.mxu0 %v939
    %1004 = vmatpush.msra.mxu0 %v937
    %1005 = vmatmul.f32.gmra.mxu0 %v904
    %v1006 = vpop.f32.mrf.mxu0
    %v1007 = vadd.f32 %v987, %v1006
    %1008 = vdwg.mxu0
    %1009 = vmatpush.msra.mxu0 %v936
    %1010 = vmatpush.msra.mxu0 %v934
    %1011 = vmatpush.msra.mxu0 %v932
    %1012 = vmatpush.msra.mxu0 %v930
    %1013 = vmatpush.msra.mxu0 %v928
    %1014 = vmatpush.msra.mxu0 %v926
    %1015 = vmatpush.msra.mxu0 %v924
    %1016 = vmatpush.msra.mxu0 %v922
    %1017 = vmatpush.msra.mxu0 %v920
    %1018 = vmatpush.msra.mxu0 %v918
    %1019 = vmatpush.msra.mxu0 %v916
    %1020 = vmatpush.msra.mxu0 %v914
    %1021 = vmatpush.msra.mxu0 %v912
    %1022 = vmatpush.msra.mxu0 %v910
    %1023 = vmatpush.msra.mxu0 %v908
    %1024 = vmatpush.msra.mxu0 %v906
    %1025 = vmatmul.f32.gmra.mxu0 %v903
    %v1026 = vpop.f32.mrf.mxu0
    %v1027 = vadd.f32 0.0, %v1026
    %1028 = vdwg.mxu0
    %1029 = vmatpush.msra.mxu0 %v968
    %1030 = vmatpush.msra.mxu0 %v966
    %1031 = vmatpush.msra.mxu0 %v964
    %1032 = vmatpush.msra.mxu0 %v962
    %1033 = vmatpush.msra.mxu0 %v960
    %1034 = vmatpush.msra.mxu0 %v958
    %1035 = vmatpush.msra.mxu0 %v956
    %1036 = vmatpush.msra.mxu0 %v954
    %1037 = vmatpush.msra.mxu0 %v952
    %1038 = vmatpush.msra.mxu0 %v950
    %1039 = vmatpush.msra.mxu0 %v948
    %1040 = vmatpush.msra.mxu0 %v946
    %1041 = vmatpush.msra.mxu0 %v944
    %1042 = vmatpush.msra.mxu0 %v942
    %1043 = vmatpush.msra.mxu0 %v940
    %1044 = vmatpush.msra.mxu0 %v938
    %1045 = vmatmul.f32.gmra.mxu0 %v904
    %v1046 = vpop.f32.mrf.mxu0
    %v1047 = vadd.f32 %v1027, %v1046
    %1048 = vdwg.mxu0
    %1049 = vst [vmem:[#allocation9] sm:$0xff] %v1007
    %1050 = vst [vmem:[#allocation9 + $0x8] sm:$0xff] %v1047
    // Predicated region
    $region30: #{tpu_custom_call.1} parent=1 // pred_check
      _
    $region31: #{tpu_custom_call.1} parent=1 // pred_check_branch
      %1052 = sbr.rel (0) target = $region33
    $region32: #{tpu_custom_call.1} parent=1 // pred_region
      %1054 = vsyncadd [#allocation5], 0
      %s1056 = sshll.u32 [#allocation9], 4
      %s1057 = int_to_ptr.vmem [resolvable:$true] %s1056
      %s1058 = sshll.u32 %s3, 4
      %s1059 = int_to_ptr.hbm [resolvable:$true] %s1058
      %1061 = dma.vmem_to_hbm [thread:$0]  %s1057, 256, %s1059, [#allocation5]
    $region33: #{tpu_custom_call.1} parent=1 // pred_fallthru
      _
    // Predicated region
    $region34: #{tpu_custom_call.1} parent=1 // pred_check
      _
    $region35: #{tpu_custom_call.1} parent=1 // pred_check_branch
      %1063 = sbr.rel (0) target = $region37
    $region36: #{tpu_custom_call.1} parent=1 // pred_region
      %1065 = dma.done [#allocation5], 256
    $region37: #{tpu_custom_call.1} parent=1 // pred_fallthru
      _
    %1066 = vsyncpa [#allocation4], 1
    %1067 = vsyncpa [#allocation7], 1
    %1068 = vsyncpa [#allocation5], 1

</llo_original>
